<compile_context>
chip_gen: v7x
topology: tpu7x:2x2x1
jax: 0.10.0
libtpu: 0.0.40
codegen_flags: <defaults>
</compile_context>

<pallas_src>
import functools

import jax
import jax.numpy as jnp
from jax.experimental import pallas as pl
from jax.experimental.pallas import tpu as pltpu

LN_EPS = 1e-5


# ----------------------------------------------------------------------------
# Kernel 1: mapper linear  (B, dim_clip) @ (dim_clip, clip_length*D) + b
# Tiled over the output dimension ("parallel") so the weight DMA pipelines.
# ----------------------------------------------------------------------------
def linear_kernel(x_ref, w_ref, b_ref, o_ref):
    o_ref[...] = (
        jnp.dot(x_ref[...].astype(jnp.bfloat16), w_ref[...],
                preferred_element_type=jnp.float32)
        + b_ref[...]
    )


def _pick_out_tile(out_dim):
    for t in (512, 256, 128):
        if out_dim % t == 0:
            return t
    return out_dim


def mapper_linear(x, w, b):
    B, dim_clip = x.shape
    out_dim = w.shape[1]
    tn = _pick_out_tile(out_dim)
    grid = (out_dim // tn,)
    cost = pl.CostEstimate(
        flops=2 * B * dim_clip * out_dim,
        transcendentals=0,
        bytes_accessed=2 * dim_clip * out_dim + 4 * out_dim
        + 4 * B * dim_clip + 4 * B * out_dim,
    )
    return pl.pallas_call(
        linear_kernel,
        out_shape=jax.ShapeDtypeStruct((B, out_dim), jnp.float32),
        grid=grid,
        in_specs=[
            pl.BlockSpec((B, dim_clip), lambda j: (0, 0)),
            pl.BlockSpec((dim_clip, tn), lambda j: (0, j)),
            pl.BlockSpec((1, tn), lambda j: (0, j)),
        ],
        out_specs=pl.BlockSpec((B, tn), lambda j: (0, j)),
        compiler_params=pltpu.CompilerParams(dimension_semantics=("parallel",)),
        cost_estimate=cost,
    )(x, w, b.reshape(1, out_dim))


# ----------------------------------------------------------------------------
# Kernel 2: the whole transformer stack, fused into one pallas_call.
# grid = (batch_tiles, num_layers); z stays resident in the output block across
# the layer axis, per-layer weights are streamed (auto double-buffered).
# ----------------------------------------------------------------------------
def fused_layers_kernel(
    z0_ref,                       # (Bt, N, D)  f32  initial activation
    g1_ref, be1_ref,              # (1, 1, D)   f32  LayerNorm1
    wq_ref, wk_ref, wv_ref,       # (1, D, D)   bf16 (scale folded into wq), no bias
    wp_ref, bp_ref,               # (1, D, D) bf16, (1, 1, D) f32
    g2_ref, be2_ref,              # (1, 1, D)   f32  LayerNorm2
    w1_ref, b1_ref,               # (1, D, Dh) bf16, (1, 1, Dh) f32
    w2_ref, b2_ref,               # (1, Dh, D) bf16, (1, 1, D) f32
    o_ref,                        # (Bt, N, D)  f32  resident residual stream
    *,
    num_heads: int,
):
    l = pl.program_id(1)

    # First layer of this batch tile: seed the resident output block with z0.
    @pl.when(l == 0)
    def _():
        o_ref[...] = z0_ref[...]

    Bt, N, D = o_ref.shape
    H = num_heads
    hd = D // H
    M = Bt * N

    z = o_ref[...].reshape(M, D)                      # f32 residual stream

    # ---- LayerNorm 1 (biased variance, eps=1e-5, affine) -- f32 ----
    mu = jnp.mean(z, axis=-1, keepdims=True)
    var = jnp.mean((z - mu) ** 2, axis=-1, keepdims=True)
    xn = (z - mu) * jax.lax.rsqrt(var + LN_EPS) * g1_ref[0] + be1_ref[0]
    xn_b = xn.astype(jnp.bfloat16)

    # ---- Multi-head self-attention (q/k/v projections on the full (M, D) tile) ----
    q = jnp.dot(xn_b, wq_ref[0], preferred_element_type=jnp.float32)   # (M, D), scale folded
    k = jnp.dot(xn_b, wk_ref[0], preferred_element_type=jnp.float32)   # (M, D)
    v = jnp.dot(xn_b, wv_ref[0], preferred_element_type=jnp.float32)   # (M, D)

    q3 = q.reshape(Bt, N, D)
    k3 = k.reshape(Bt, N, D)
    v3 = v.reshape(Bt, N, D)

    # TODO(synk): when head_dim is a multiple of 128, fold heads into the batched
    # dot as well (single (Bt*H, N, hd) einsum) instead of the per-head loop.
    head_outs = []
    for h in range(H):
        lo = h * hd
        qh = q3[:, :, lo:lo + hd]                     # (Bt, N, hd)
        kh = k3[:, :, lo:lo + hd]
        vh = v3[:, :, lo:lo + hd]
        s = jnp.einsum("bnd,bmd->bnm", qh, kh,
                       preferred_element_type=jnp.float32)             # (Bt, N, N)
        s = s - jnp.max(s, axis=-1, keepdims=True)
        p = jnp.exp(s)
        p = p * pl.reciprocal(jnp.sum(p, axis=-1, keepdims=True), approx=True)
        head_outs.append(jnp.einsum("bnm,bmd->bnd", p, vh,
                                    preferred_element_type=jnp.float32))
    ctx = jnp.concatenate(head_outs, axis=-1).reshape(M, D)             # (M, D)

    attn = jnp.dot(ctx.astype(jnp.bfloat16), wp_ref[0],
                   preferred_element_type=jnp.float32) + bp_ref[0]
    z = z + attn                                       # residual 1

    # ---- LayerNorm 2 + MLP (relu; dropout is identity in eval) ----
    mu2 = jnp.mean(z, axis=-1, keepdims=True)
    var2 = jnp.mean((z - mu2) ** 2, axis=-1, keepdims=True)
    xn2 = (z - mu2) * jax.lax.rsqrt(var2 + LN_EPS) * g2_ref[0] + be2_ref[0]

    h1 = jnp.dot(xn2.astype(jnp.bfloat16), w1_ref[0],
                 preferred_element_type=jnp.float32) + b1_ref[0]
    h1 = jnp.maximum(h1, 0.0)
    h2 = jnp.dot(h1.astype(jnp.bfloat16), w2_ref[0],
                 preferred_element_type=jnp.float32) + b2_ref[0]

    o_ref[...] = (z + h2).reshape(Bt, N, D)            # residual 2


def _pick_batch_tile(B, N, target_rows=256):
    best = 1
    for bt in range(1, B + 1):
        if B % bt == 0 and bt * N <= max(target_rows, N):
            best = bt
    return best


def fused_transformer(z0, params, *, num_heads, batch_tile=None):
    B, N, D = z0.shape
    L = params["wq"].shape[0]
    Dh = params["w1"].shape[2]
    Bt = batch_tile if batch_tile is not None else _pick_batch_tile(B, N)
    assert B % Bt == 0
    n_bt = B // Bt

    zmap = lambda bt, l: (bt, 0, 0)
    wmap = lambda bt, l: (l, 0, 0)

    M = B * N
    flops_layer = 8 * M * D * D + 4 * M * N * D + 4 * M * D * Dh
    bytes_layer = 2 * (4 * D * D + 2 * D * Dh) + 4 * (5 * D + Dh)
    cost = pl.CostEstimate(
        flops=int(L * flops_layer),
        transcendentals=int(L * (num_heads * M * N + 2 * M)),
        bytes_accessed=int(L * bytes_layer + 2 * 4 * M * D),
    )

    kernel = functools.partial(fused_layers_kernel, num_heads=num_heads)
    return pl.pallas_call(
        kernel,
        out_shape=jax.ShapeDtypeStruct((B, N, D), jnp.float32),
        grid=(n_bt, L),
        in_specs=[
            pl.BlockSpec((Bt, N, D), zmap),     # z0
            pl.BlockSpec((1, 1, D), wmap),      # g1
            pl.BlockSpec((1, 1, D), wmap),      # be1
            pl.BlockSpec((1, D, D), wmap),      # wq (scaled)
            pl.BlockSpec((1, D, D), wmap),      # wk
            pl.BlockSpec((1, D, D), wmap),      # wv
            pl.BlockSpec((1, D, D), wmap),      # wp
            pl.BlockSpec((1, 1, D), wmap),      # bp
            pl.BlockSpec((1, 1, D), wmap),      # g2
            pl.BlockSpec((1, 1, D), wmap),      # be2
            pl.BlockSpec((1, D, Dh), wmap),     # w1
            pl.BlockSpec((1, 1, Dh), wmap),     # b1
            pl.BlockSpec((1, Dh, D), wmap),     # w2
            pl.BlockSpec((1, 1, D), wmap),      # b2
        ],
        out_specs=pl.BlockSpec((Bt, N, D), zmap),
        compiler_params=pltpu.CompilerParams(
            dimension_semantics=("parallel", "arbitrary"),
            vmem_limit_bytes=32 * 1024 * 1024,   # explicit budget (v7x has 64 MiB total)
        ),
        cost_estimate=cost,
    )(
        z0,
        params["g1"], params["be1"],
        params["wq"], params["wk"], params["wv"],
        params["wp"], params["bp"],
        params["g2"], params["be2"],
        params["w1"], params["b1"],
        params["w2"], params["b2"],
    )


# ----------------------------------------------------------------------------
# Parameter construction (synthetic, deterministic) and full forward pass.
# Per-layer weights are stacked with a leading L axis; matmul weights are bf16;
# the 1/sqrt(head_dim) attention scale is folded into wq.
# ----------------------------------------------------------------------------
def init_params(key, dim_clip, dim_embedding, prefix_length, clip_length,
                num_layers, num_heads=8, mlp_ratio=2.0):
    D = dim_embedding
    Dh = int(D * mlp_ratio)
    hd = D // num_heads
    scale = hd ** -0.5
    L = num_layers
    keys = jax.random.split(key, 7)

    def w(k, shape, s=0.02):
        return (jax.random.normal(k, shape, jnp.float32) * s).astype(jnp.bfloat16)

    return {
        "lin_w": w(keys[0], (dim_clip, clip_length * D)),
        "lin_b": jnp.zeros((clip_length * D,), jnp.float32),
        "prefix_const": jax.random.normal(keys[1], (prefix_length, D), jnp.float32),
        "g1": jnp.ones((L, 1, D), jnp.float32),
        "be1": jnp.zeros((L, 1, D), jnp.float32),
        "wq": w(keys[2], (L, D, D), 0.02 * scale),      # scale folded into wq
        "wk": w(keys[3], (L, D, D)),
        "wv": w(keys[4], (L, D, D)),
        "wp": w(keys[5], (L, D, D)),
        "bp": jnp.zeros((L, 1, D), jnp.float32),
        "g2": jnp.ones((L, 1, D), jnp.float32),
        "be2": jnp.zeros((L, 1, D), jnp.float32),
        "w1": w(keys[6], (L, D, Dh)),
        "b1": jnp.zeros((L, 1, Dh), jnp.float32),
        "w2": w(jax.random.fold_in(keys[6], 1), (L, Dh, D)),
        "b2": jnp.zeros((L, 1, D), jnp.float32),
    }


def transformer_mapper_forward(x, params, clip_length, num_heads=8, batch_tile=None):
    B = x.shape[0]
    D = params["prefix_const"].shape[1]
    mapped = mapper_linear(x, params["lin_w"], params["lin_b"])
    mapped = mapped.reshape(B, clip_length, D)
    prefix = jnp.broadcast_to(params["prefix_const"][None],
                              (B,) + params["prefix_const"].shape)
    z0 = jnp.concatenate([mapped, prefix], axis=1)        # (B, N, D)
    z = fused_transformer(z0, params, num_heads=num_heads, batch_tile=batch_tile)
    return z[:, clip_length:]


# ----------------------------------------------------------------------------
# Pure-JAX reference (same bf16-weight / f32-accumulation precision policy).
# ----------------------------------------------------------------------------
def reference_forward(x, params, clip_length, num_heads=8):
    def bdot(a, b):
        return jnp.dot(a.astype(jnp.bfloat16), b, preferred_element_type=jnp.float32)

    def ln(t, g, b):
        mu = jnp.mean(t, -1, keepdims=True)
        var = jnp.mean((t - mu) ** 2, -1, keepdims=True)
        return (t - mu) * jax.lax.rsqrt(var + LN_EPS) * g + b

    B = x.shape[0]
    D = params["prefix_const"].shape[1]
    hd = D // num_heads
    L = params["wq"].shape[0]

    z = (bdot(x, params["lin_w"]) + params["lin_b"]).reshape(B, clip_length, D)
    prefix = jnp.broadcast_to(params["prefix_const"][None],
                              (B,) + params["prefix_const"].shape)
    z = jnp.concatenate([z, prefix], axis=1)
    N = z.shape[1]

    for l in range(L):
        xn = ln(z, params["g1"][l], params["be1"][l])
        q = bdot(xn, params["wq"][l])                    # scale already folded in
        k = bdot(xn, params["wk"][l])
        v = bdot(xn, params["wv"][l])
        qh = q.reshape(B, N, num_heads, hd)
        kh = k.reshape(B, N, num_heads, hd)
        vh = v.reshape(B, N, num_heads, hd)
        att = jnp.einsum("bnhd,bmhd->bnmh", qh, kh)
        att = jax.nn.softmax(att, axis=2)
        ctx = jnp.einsum("bnmh,bmhd->bnhd", att, vh).reshape(B, N, D)
        z = z + bdot(ctx, params["wp"][l]) + params["bp"][l]
        xn2 = ln(z, params["g2"][l], params["be2"][l])
        h1 = jnp.maximum(bdot(xn2, params["w1"][l]) + params["b1"][l], 0.0)
        z = z + bdot(h1, params["w2"][l]) + params["b2"][l]
    return z[:, clip_length:]


if __name__ == "__main__":
    # Small shapes consistent with the module's forward.
    B = 2
    dim_clip = 64
    dim_embedding = 32          # divisible by 8 heads -> head_dim = 4
    prefix_length = 8
    clip_length = 8
    num_layers = 2
    num_heads = 8

    key = jax.random.PRNGKey(0)
    k_params, k_x = jax.random.split(key)
    params = init_params(k_params, dim_clip, dim_embedding,
                         prefix_length, clip_length, num_layers, num_heads)
    x = jax.random.normal(k_x, (B, dim_clip), jnp.float32)

    out = transformer_mapper_forward(x, params, clip_length, num_heads)
    out = jax.block_until_ready(out)
    assert out.shape == (B, prefix_length, dim_embedding), out.shape

    ref = jax.block_until_ready(reference_forward(x, params, clip_length, num_heads))
    max_err = float(jnp.max(jnp.abs(out - ref)))
    assert jnp.allclose(out, ref, atol=1e-2, rtol=1e-2), max_err

    print("KERNEL_OK")
</pallas_src>

<mosaic_0001>
module attributes {stable_mosaic.version = 11 : i64} {
  func.func @linear_kernel(%arg0: i32, %arg1: memref<2x64xf32, #tpu.memory_space<vmem>>, %arg2: memref<64x256xbf16, #tpu.memory_space<vmem>>, %arg3: memref<1x256xf32, #tpu.memory_space<vmem>>, %arg4: memref<2x256xf32, #tpu.memory_space<vmem>>) attributes {dimension_semantics = [#tpu.dimension_semantics<parallel>], iteration_bounds = array<i64: 1>, scalar_prefetch = 0 : i64, scratch_operands = 0 : i64, tpu.core_type = #tpu.core_type<tc>, window_params = [{pipeline_mode = #tpu.pipeline_mode<synchronous>, transform_indices = @transform_0, window_bounds = array<i64: 2, 64>}, {transform_indices = @transform_1, window_bounds = array<i64: 64, 256>}, {transform_indices = @transform_2, window_bounds = array<i64: 1, 256>}, {transform_indices = @transform_3, window_bounds = array<i64: 2, 256>}]} {
    %c0 = arith.constant 0 : index
    %c0_0 = arith.constant 0 : index
    %0 = vector.load %arg1[%c0, %c0_0] : memref<2x64xf32, #tpu.memory_space<vmem>>, vector<2x64xf32>
    %1 = arith.truncf %0 : vector<2x64xf32> to vector<2x64xbf16>
    %c0_1 = arith.constant 0 : index
    %c0_2 = arith.constant 0 : index
    %2 = vector.load %arg2[%c0_1, %c0_2] : memref<64x256xbf16, #tpu.memory_space<vmem>>, vector<64x256xbf16>
    %cst = arith.constant dense<0.000000e+00> : vector<2x256xf32>
    %3 = tpu.matmul %1, %2, %cst {dimension_numbers = #tpu.dot_dimension_numbers<[1], [0], [0], [1], [0, 0, 1, 1], [], []>} : vector<2x64xbf16>, vector<64x256xbf16>, vector<2x256xf32> -> vector<2x256xf32>
    %c0_3 = arith.constant 0 : index
    %c0_4 = arith.constant 0 : index
    %4 = vector.load %arg3[%c0_3, %c0_4] : memref<1x256xf32, #tpu.memory_space<vmem>>, vector<1x256xf32>
    %5 = vector.broadcast %4 : vector<1x256xf32> to vector<2x256xf32>
    %6 = arith.addf %3, %5 : vector<2x256xf32>
    %c0_5 = arith.constant 0 : index
    %c0_6 = arith.constant 0 : index
    %7 = vector.load %arg4[%c0_5, %c0_6] : memref<2x256xf32, #tpu.memory_space<vmem>>, vector<2x256xf32>
    tpu.vector_store %arg4[%c0_5, %c0_6], %6 {strides = array<i32>} : memref<2x256xf32, #tpu.memory_space<vmem>>, vector<2x256xf32>,
    return
  }
  func.func @transform_0(%arg0: i32) -> (i32, i32) {
    %c0_i32 = arith.constant 0 : i32
    %c0_i32_0 = arith.constant 0 : i32
    %c0_i32_1 = arith.constant 0 : i32
    return %c0_i32, %c0_i32_0 : i32, i32
  }
  func.func @transform_1(%arg0: i32) -> (i32, i32) {
    %c0_i32 = arith.constant 0 : i32
    %c0_i32_0 = arith.constant 0 : i32
    return %c0_i32, %arg0 : i32, i32
  }
  func.func @transform_2(%arg0: i32) -> (i32, i32) {
    %c0_i32 = arith.constant 0 : i32
    %c0_i32_0 = arith.constant 0 : i32
    return %c0_i32, %arg0 : i32, i32
  }
  func.func @transform_3(%arg0: i32) -> (i32, i32) {
    %c0_i32 = arith.constant 0 : i32
    %c0_i32_0 = arith.constant 0 : i32
    return %c0_i32, %arg0 : i32, i32
  }
}

</mosaic_0001>

<llo_original>
// kernel: tpu_custom_call.1
$region0: #{tpu_custom_call.1}
  #allocation0 [shape = 'u32[]', space=smem, size = 0x4, offset = 0x4, fixed_abs, tag = 'smem constant byte address 0x4 - core index']
  #allocation1 [shape = 'u32[144,128]{1,0:T(1,128)}', space=vmem, size = 0x12000, scoped, tag = 'internal scratch']
  %s0 = inlined_call_operand.hbm [shape: f32[2,64], index: 0, kind: input, shape index: {}]
  %s1 = inlined_call_operand.hbm [shape: bf16[64,256], index: 1, kind: input, shape index: {}]
  %s2 = inlined_call_operand.vmem [shape: f32[1,256], index: 2, kind: input, shape index: {}]
  %s3 = inlined_call_operand.hbm [shape: f32[2,256], index: 3, kind: output, shape index: {}]
  %s4 = sld [smem:[#allocation0]]
  $region30: #{tpu_custom_call.1} parent=0
    _
  %s6 = ssub.s32 1, %s4
  %s7 = scalar_select 0, %s6, %s4
  $region1: #{tpu_custom_call.1} parent=0
    #allocation2 [shape = 'u8[1024]{0}', space=vmem, size = 0x400, scoped, tag = 'input window, operand 0, single buffered']
    #allocation3 [shape = 's32[1]{0}', space=sflag, size = 0x4, scoped, tag = 'scoped memory for tpu_custom_call.1']
    #allocation4 [shape = 's32[1]{0}', space=sflag, size = 0x4, scoped, tag = 'scoped memory for tpu_custom_call.1']
    #allocation5 [shape = 'u8[32768]{0}', space=vmem, size = 0x8000, scoped, tag = 'input window, operand 1, single buffered']
    #allocation6 [shape = 's32[1]{0}', space=sflag, size = 0x4, scoped, tag = 'scoped memory for tpu_custom_call.1']
    #allocation7 [shape = 'u8[2048]{0}', space=vmem, size = 0x800, scoped, tag = 'output window, operand 0, single buffered']
    %8 = vsyncpa [#allocation3], 0
    %9 = vsyncpa [#allocation6], 0
    %10 = vsyncpa [#allocation4], 0
    // Predicated region
    $region2: #{tpu_custom_call.1} parent=1 // pred_check
      _
    $region3: #{tpu_custom_call.1} parent=1 // pred_check_branch
      %12 = sbr.rel (0) target = $region5
    $region4: #{tpu_custom_call.1} parent=1 // pred_region
      %s14 = ssub.s32 32, 32
      %15 = vsyncadd [#allocation3], %s14
      %s17 = sshll.u32 [#allocation2], 4
      %s18 = int_to_ptr.vmem [resolvable:$true] %s17
      %20 = dma.hbm_to_vmem [thread:$0]  %s0, 32, %s18, [#allocation3]
    $region5: #{tpu_custom_call.1} parent=1 // pred_fallthru
      _
    // Predicated region
    $region6: #{tpu_custom_call.1} parent=1 // pred_check
      _
    $region7: #{tpu_custom_call.1} parent=1 // pred_check_branch
      %22 = sbr.rel (0) target = $region9
    $region8: #{tpu_custom_call.1} parent=1 // pred_region
      %s24 = ssub.s32 1024, 1024
      %25 = vsyncadd [#allocation6], %s24
      %s26 = sshll.u32 [#allocation5], 4
      %s27 = int_to_ptr.vmem [resolvable:$true] %s26
      %32 = dma.hbm_to_vmem [thread:$0]  %s1, 1024, %s27, [#allocation6], 128, 128, 8
    $region9: #{tpu_custom_call.1} parent=1 // pred_fallthru
      _
    // Predicated region
    $region10: #{tpu_custom_call.1} parent=1 // pred_check
      _
    $region11: #{tpu_custom_call.1} parent=1 // pred_check_branch
      %34 = sbr.rel (0) target = $region13
    $region12: #{tpu_custom_call.1} parent=1 // pred_region
      _
    $region13: #{tpu_custom_call.1} parent=1 // pred_fallthru
      _
    // Predicated region
    $region14: #{tpu_custom_call.1} parent=1 // pred_check
      _
    $region15: #{tpu_custom_call.1} parent=1 // pred_check_branch
      %36 = sbr.rel (0) target = $region17
    $region16: #{tpu_custom_call.1} parent=1 // pred_region
      %37 = dma.done [#allocation3], 32
    $region17: #{tpu_custom_call.1} parent=1 // pred_fallthru
      _
    // Predicated region
    $region18: #{tpu_custom_call.1} parent=1 // pred_check
      _
    $region19: #{tpu_custom_call.1} parent=1 // pred_check_branch
      %39 = sbr.rel (0) target = $region21
    $region20: #{tpu_custom_call.1} parent=1 // pred_region
      %40 = dma.done [#allocation6], 1024
    $region21: #{tpu_custom_call.1} parent=1 // pred_fallthru
      _
    %v42 = vld [vmem:[#allocation2] sm:$0x3]
    %v43 = vpack.c.bf16 %v42, %v42
    %v44 = vld [vmem:[#allocation5] sm:$0xff]
    %v45 = vld [vmem:[#allocation5 + $0x8] sm:$0xff]
    %v46 = vld [vmem:[#allocation5 + $0x10] sm:$0xff]
    %v47 = vld [vmem:[#allocation5 + $0x18] sm:$0xff]
    %v48 = vld [vmem:[#allocation5 + $0x20] sm:$0xff]
    %v49 = vld [vmem:[#allocation5 + $0x28] sm:$0xff]
    %v50 = vld [vmem:[#allocation5 + $0x30] sm:$0xff]
    %v51 = vld [vmem:[#allocation5 + $0x38] sm:$0xff]
    %v52 = vld [vmem:[%s2] sm:$0x3]
    %v54 = vlaneseq
    %v55 = vshrl.u32 %v54, 7
    %v56 = vsub.s32 0, %v55
    %v57 = vrot.slane %v52, %v56
    %v58 = vlaneseq
    %v59 = vshrl.u32 %v58, 7
    %v60 = vsub.s32 1, %v59
    %v61 = vrot.slane %v52, %v60
    %v72 = vunpack.c.l.b16 %v44
    %v73 = vunpack.c.h.b16 %v44
    %v74 = vunpack.c.l.b16 %v45
    %v75 = vunpack.c.h.b16 %v45
    %v76 = vunpack.c.l.b16 %v46
    %v77 = vunpack.c.h.b16 %v46
    %v78 = vunpack.c.l.b16 %v47
    %v79 = vunpack.c.h.b16 %v47
    %v80 = vunpack.c.l.b16 %v48
    %v81 = vunpack.c.h.b16 %v48
    %v82 = vunpack.c.l.b16 %v49
    %v83 = vunpack.c.h.b16 %v49
    %v84 = vunpack.c.l.b16 %v50
    %v85 = vunpack.c.h.b16 %v50
    %v86 = vunpack.c.l.b16 %v51
    %v87 = vunpack.c.h.b16 %v51
    %v88 = vpack.c.b16 %v74, %v72
    %v89 = vpack.c.b16 %v75, %v73
    %v90 = vpack.c.b16 %v78, %v76
    %v91 = vpack.c.b16 %v79, %v77
    %v92 = vpack.c.b16 %v82, %v80
    %v93 = vpack.c.b16 %v83, %v81
    %v94 = vpack.c.b16 %v86, %v84
    %v95 = vpack.c.b16 %v87, %v85
    %vm104 = vcmask 523264
    %v106 = vsel %vm104, %v43, 0
    %108 = vmatprep.subr.bf16.mxu0 %v89
    %109 = vmatpush1.bf16.msra.mxu0 %v88
    %110 = vmatprep.subr.bf16.mxu0 %v91
    %111 = vmatpush1.bf16.msra.mxu0 %v90
    %112 = vmatprep.subr.bf16.mxu0 %v93
    %113 = vmatpush1.bf16.msra.mxu0 %v92
    %114 = vmatprep.subr.bf16.mxu0 %v95
    %115 = vmatpush1.bf16.msra.mxu0 %v94
    %116 = vmatprep.subr.bf16.mxu0 0
    %117 = vmatpush1.bf16.msra.mxu0 0
    %118 = vmatprep.subr.bf16.mxu0 0
    %119 = vmatpush1.bf16.msra.mxu0 0
    %120 = vmatprep.subr.bf16.mxu0 0
    %121 = vmatpush1.bf16.msra.mxu0 0
    %122 = vmatprep.subr.bf16.mxu0 0
    %123 = vmatpush1.bf16.msra.mxu0 0
    %124 = vmatprep.subr.bf16.mxu0 0
    %125 = vmatpush1.bf16.msra.mxu0 0
    %126 = vmatprep.subr.bf16.mxu0 0
    %127 = vmatpush1.bf16.msra.mxu0 0
    %128 = vmatprep.subr.bf16.mxu0 0
    %129 = vmatpush1.bf16.msra.mxu0 0
    %130 = vmatprep.subr.bf16.mxu0 0
    %131 = vmatpush1.bf16.msra.mxu0 0
    %132 = vmatprep.subr.bf16.mxu0 0
    %133 = vmatpush1.bf16.msra.mxu0 0
    %134 = vmatprep.subr.bf16.mxu0 0
    %135 = vmatpush1.bf16.msra.mxu0 0
    %136 = vmatprep.subr.bf16.mxu0 0
    %137 = vmatpush1.bf16.msra.mxu0 0
    %138 = vmatprep.subr.bf16.mxu0 0
    %139 = vmatpush1.bf16.msra.mxu0 0
    %140 = vmatprep.mubr.bf16.mxu0 0
    %141 = vmatmul.mubr.bf16.gmra.mrb[0].mxu0 %v106
    %v142 = vpop.f32.mrb[0].mxu0
    %v143 = vadd.f32 %v57, %v142
    %v144 = vpop.f32.mrb[0].mxu0
    %v145 = vadd.f32 %v61, %v144
    %v146 = vpop.f32.mrb[0].mxu0
    %v147 = vpop.f32.mrb[0].mxu0
    %148 = vdwg.mxu0
    %v151 = vcombine.low %v143, %v145
    %v153 = vunpack.c.l.s4 1983009808
    %v154 = vunpack.c.0.s8 %v153
    %v155 = vlaneseq
    %v156 = vshrl.u32 %v155, 7
    %v157 = vsub.s32 %v154, %v156
    %v158 = vrot.slane %v151, %v157
    %160 = vst [vmem:[#allocation7] sm:$0xf] %v158
    // Predicated region
    $region22: #{tpu_custom_call.1} parent=1 // pred_check
      _
    $region23: #{tpu_custom_call.1} parent=1 // pred_check_branch
      %162 = sbr.rel (0) target = $region25
    $region24: #{tpu_custom_call.1} parent=1 // pred_region
      %s164 = ssub.s32 64, 64
      %165 = vsyncadd [#allocation4], %s164
      %s167 = sshll.u32 [#allocation7], 4
      %s168 = int_to_ptr.vmem [resolvable:$true] %s167
      %170 = dma.vmem_to_hbm [thread:$0]  %s168, 64, %s3, [#allocation4]
    $region25: #{tpu_custom_call.1} parent=1 // pred_fallthru
      _
    // Predicated region
    $region26: #{tpu_custom_call.1} parent=1 // pred_check
      _
    $region27: #{tpu_custom_call.1} parent=1 // pred_check_branch
      %172 = sbr.rel (0) target = $region29
    $region28: #{tpu_custom_call.1} parent=1 // pred_region
      %173 = dma.done [#allocation4], 64
    $region29: #{tpu_custom_call.1} parent=1 // pred_fallthru
      _
    %174 = vsyncpa [#allocation3], 1
    %175 = vsyncpa [#allocation6], 1
    %176 = vsyncpa [#allocation4], 1

</llo_original>
